<compile_context>
chip_gen: v6e
topology: v6e:2x2x1
jax: 0.10.0
libtpu: 0.0.40
codegen_flags: <defaults>
</compile_context>

<pallas_src>
import functools
import numpy as np

import jax
import jax.numpy as jnp
from jax.experimental import pallas as pl
from jax.experimental.pallas import tpu as pltpu


# ----------------------------------------------------------------------------
# Fused Pallas kernel
# ----------------------------------------------------------------------------
def _fused_clip_kernel(*refs, has_image, has_pseudo, with_emb):
    """Fused CustomCLIP forward.

    refs (in order) = [scale] (+ [x, w_img] if has_image) + [prompts, w_text]
                      (+ [pseudo] if has_pseudo)
                      (+ [logits] (+ [emb] if with_emb) if has_image)
                      (+ [logits_pseudo] if has_pseudo)
    """
    it = iter(refs)
    scale_ref = next(it)                       # (1,) f32 in SMEM, already exp()'ed
    if has_image:
        x_ref = next(it)                       # (B, Kimg) bf16
        wimg_ref = next(it)                    # (Kimg, D) bf16
    p_ref = next(it)                           # (n_cls, Ktxt) bf16
    wtxt_ref = next(it)                        # (Ktxt, D) bf16
    if has_pseudo:
        pseudo_ref = next(it)                  # (Bp, D) bf16
    logits_ref = next(it) if has_image else None
    emb_ref = next(it) if (has_image and with_emb) else None
    plogits_ref = next(it) if has_pseudo else None

    eps = jnp.float32(1e-12)
    scale = scale_ref[0]                       # f32 scalar

    # text encoder (stand-in linear) + L2 normalization (f32 math, rsqrt on EUP)
    txtf = jnp.dot(p_ref[...], wtxt_ref[...], preferred_element_type=jnp.float32)
    txt_n = txtf * jax.lax.rsqrt(jnp.sum(txtf * txtf, axis=-1, keepdims=True) + eps)
    txt_n_bf = txt_n.astype(jnp.bfloat16)

    if has_image:
        imgf = jnp.dot(x_ref[...], wimg_ref[...], preferred_element_type=jnp.float32)
        img_n = imgf * jax.lax.rsqrt(jnp.sum(imgf * imgf, axis=-1, keepdims=True) + eps)
        sim = jax.lax.dot_general(
            img_n.astype(jnp.bfloat16), txt_n_bf,
            dimension_numbers=(((1,), (1,)), ((), ())),       # img_n @ txt_n.T
            preferred_element_type=jnp.float32,
        )
        logits_ref[...] = (scale * sim).astype(logits_ref.dtype)
        if with_emb:
            emb_ref[...] = img_n.astype(emb_ref.dtype)

    if has_pseudo:
        sim_p = jax.lax.dot_general(
            pseudo_ref[...], txt_n_bf,                        # pseudo (already bf16)
            dimension_numbers=(((1,), (1,)), ((), ())),       # pseudo @ txt_n.T
            preferred_element_type=jnp.float32,
        )
        plogits_ref[...] = (scale * sim_p).astype(plogits_ref.dtype)


def clip_fused_forward(scale_exp, prompts, w_text, image_flat=None, w_img=None,
                       pseudo_feat=None, with_emb=False):
    """Build + run the fused pallas_call. Returns a tuple of outputs:
       [logits] (+ [emb] if with_emb)  (+ [logits_pseudo] if pseudo given)."""
    has_image = image_flat is not None
    has_pseudo = pseudo_feat is not None
    assert has_image or has_pseudo
    n_cls, kt = prompts.shape
    d = w_text.shape[1]

    in_specs = [pl.BlockSpec(memory_space=pltpu.MemorySpace.SMEM)]   # exp(logit_scale)
    inputs = [scale_exp]
    if has_image:
        b, ki = image_flat.shape
        in_specs += [pl.BlockSpec((b, ki), lambda i: (0, 0)),
                     pl.BlockSpec((ki, d), lambda i: (0, 0))]
        inputs += [image_flat, w_img]
    in_specs += [pl.BlockSpec((n_cls, kt), lambda i: (0, 0)),
                 pl.BlockSpec((kt, d), lambda i: (0, 0))]
    inputs += [prompts, w_text]
    if has_pseudo:
        bp, dp = pseudo_feat.shape
        assert dp == d
        in_specs += [pl.BlockSpec((bp, dp), lambda i: (0, 0))]
        inputs += [pseudo_feat]

    out_shapes, out_specs = [], []
    if has_image:
        out_shapes.append(jax.ShapeDtypeStruct((b, n_cls), jnp.float32))
        out_specs.append(pl.BlockSpec((b, n_cls), lambda i: (0, 0)))
        if with_emb:
            out_shapes.append(jax.ShapeDtypeStruct((b, d), jnp.float32))
            out_specs.append(pl.BlockSpec((b, d), lambda i: (0, 0)))
    if has_pseudo:
        out_shapes.append(jax.ShapeDtypeStruct((bp, n_cls), jnp.float32))
        out_specs.append(pl.BlockSpec((bp, n_cls), lambda i: (0, 0)))

    kernel = functools.partial(_fused_clip_kernel, has_image=has_image,
                               has_pseudo=has_pseudo, with_emb=with_emb and has_image)
    return pl.pallas_call(
        kernel,
        out_shape=tuple(out_shapes),
        grid=(1,),
        in_specs=in_specs,
        out_specs=tuple(out_specs),
    )(*inputs)


# ----------------------------------------------------------------------------
# CustomCLIP (JAX / Pallas)
# ----------------------------------------------------------------------------
class CustomCLIPPallas:
    def __init__(self, key, *, n_cls=8, n_ctx=16, ctx_dim=32,
                 embed_dim=128, img_channels=4, img_size=16):
        k_ctx, k_txt, k_img = jax.random.split(key, 3)
        self.n_cls = n_cls
        self.embed_dim = embed_dim
        self.img_feat_dim = img_channels * img_size * img_size

        # prompt_learner: learnable context vectors (n_cls, n_ctx, ctx_dim), kept f32.
        self.ctx = 0.02 * jax.random.normal(k_ctx, (n_cls, n_ctx, ctx_dim), jnp.float32)
        # stand-in text encoder projection (bf16 for native MXU + half the DMA bytes)
        self.w_text = ((1.0 / np.sqrt(n_ctx * ctx_dim)) * jax.random.normal(
            k_txt, (n_ctx * ctx_dim, embed_dim), jnp.float32)).astype(jnp.bfloat16)
        # stand-in image encoder projection
        self.w_img = ((1.0 / np.sqrt(self.img_feat_dim)) * jax.random.normal(
            k_img, (self.img_feat_dim, embed_dim), jnp.float32)).astype(jnp.bfloat16)
        # CLIP's logit_scale init: ln(1/0.07)
        self.logit_scale = jnp.array(np.log(1.0 / 0.07), dtype=jnp.float32)

    # exp(logit_scale) is hoisted out of the kernel (per-step scalar)
    def _scale_exp(self):
        return jnp.exp(self.logit_scale).reshape(1).astype(jnp.float32)

    def _prompts(self):
        return self.ctx.reshape(self.n_cls, -1).astype(jnp.bfloat16)

    # ----- CustomCLIP.forward -----
    def forward(self, image, pseudo_feat=None, with_emb=False):
        b = image.shape[0]
        x = image.reshape(b, -1).astype(jnp.bfloat16)        # NCHW -> (B, C*H*W), bf16
        prompts = self._prompts()
        scale = self._scale_exp()

        if with_emb:
            logits, emb = clip_fused_forward(
                scale, prompts, self.w_text, image_flat=x, w_img=self.w_img,
                with_emb=True)
            return logits, emb
        if pseudo_feat is not None:
            # PyTorch: pseudo_feat.half() @ text_features.t() (pseudo NOT normalized);
            # half() modeled as bf16 cast. Same kernel, shared normalized text features.
            logits, logits_pseudo = clip_fused_forward(
                scale, prompts, self.w_text, image_flat=x, w_img=self.w_img,
                pseudo_feat=pseudo_feat.astype(jnp.bfloat16))
            return logits, logits_pseudo
        (logits,) = clip_fused_forward(
            scale, prompts, self.w_text, image_flat=x, w_img=self.w_img)
        return logits

    # ----- CustomCLIP.forward_pseudo -----
    def forward_pseudo(self, pseudo_feat):
        (logits,) = clip_fused_forward(
            self._scale_exp(), self._prompts(), self.w_text,
            pseudo_feat=pseudo_feat.astype(jnp.bfloat16))
        return logits


# ----------------------------------------------------------------------------
# Reference (pure JAX, bf16-matched operands) for validation
# ----------------------------------------------------------------------------
def _ref_forward(model, image, pseudo_feat=None):
    f32 = jnp.float32
    x = image.reshape(image.shape[0], -1).astype(jnp.bfloat16).astype(f32)
    prompts = model.ctx.reshape(model.n_cls, -1).astype(jnp.bfloat16).astype(f32)
    imgf = x @ model.w_img.astype(f32)
    txtf = prompts @ model.w_text.astype(f32)
    imgf_n = imgf / jnp.linalg.norm(imgf, axis=-1, keepdims=True)
    txtf_n = txtf / jnp.linalg.norm(txtf, axis=-1, keepdims=True)
    scale = jnp.exp(model.logit_scale)
    logits = scale * imgf_n @ txtf_n.T
    if pseudo_feat is not None:
        p = pseudo_feat.astype(jnp.bfloat16).astype(f32)
        return logits, scale * p @ txtf_n.T
    return logits


if __name__ == "__main__":
    key = jax.random.PRNGKey(0)
    k_model, k_img, k_pseudo = jax.random.split(key, 3)

    B, C, H, W = 8, 4, 16, 16
    N_CLS, EMBED = 8, 128

    model = CustomCLIPPallas(k_model, n_cls=N_CLS, n_ctx=16, ctx_dim=32,
                             embed_dim=EMBED, img_channels=C, img_size=H)

    image = jax.random.normal(k_img, (B, C, H, W), jnp.float32)
    pseudo_feat = jax.random.normal(k_pseudo, (B, EMBED), jnp.float32)

    logits = model.forward(image)
    logits2, logits_pseudo = model.forward(image, pseudo_feat=pseudo_feat)
    logits3, emb = model.forward(image, with_emb=True)
    logits_fp = model.forward_pseudo(pseudo_feat)

    jax.block_until_ready((logits, logits2, logits_pseudo, logits3, emb, logits_fp))

    # validate against pure-JAX reference
    ref_logits, ref_pseudo = _ref_forward(model, image, pseudo_feat)
    np.testing.assert_allclose(np.asarray(logits), np.asarray(ref_logits),
                               rtol=5e-2, atol=5e-1)
    np.testing.assert_allclose(np.asarray(logits2), np.asarray(ref_logits),
                               rtol=5e-2, atol=5e-1)
    np.testing.assert_allclose(np.asarray(logits3), np.asarray(ref_logits),
                               rtol=5e-2, atol=5e-1)
    np.testing.assert_allclose(np.asarray(logits_pseudo), np.asarray(ref_pseudo),
                               rtol=5e-2, atol=5e-1)
    np.testing.assert_allclose(np.asarray(logits_fp), np.asarray(ref_pseudo),
                               rtol=5e-2, atol=5e-1)

    print("KERNEL_OK")
</pallas_src>

<mosaic_0001>
module attributes {stable_mosaic.version = 11 : i64} {
  func.func @_fused_clip_kernel(%arg0: i32, %arg1: memref<1xf32, #tpu.memory_space<smem>>, %arg2: memref<8x1024xbf16, #tpu.memory_space<vmem>>, %arg3: memref<1024x128xbf16, #tpu.memory_space<vmem>>, %arg4: memref<8x512xbf16, #tpu.memory_space<vmem>>, %arg5: memref<512x128xbf16, #tpu.memory_space<vmem>>, %arg6: memref<8x8xf32, #tpu.memory_space<vmem>>) attributes {dimension_semantics = [#tpu.dimension_semantics<arbitrary>], iteration_bounds = array<i64: 1>, scalar_prefetch = 0 : i64, scratch_operands = 0 : i64, tpu.core_type = #tpu.core_type<tc>, window_params = [{transform_indices = @transform_0, window_bounds = array<i64: 1>}, {pipeline_mode = #tpu.pipeline_mode<synchronous>, transform_indices = @transform_1, window_bounds = array<i64: 8, 1024>}, {pipeline_mode = #tpu.pipeline_mode<synchronous>, transform_indices = @transform_2, window_bounds = array<i64: 1024, 128>}, {pipeline_mode = #tpu.pipeline_mode<synchronous>, transform_indices = @transform_3, window_bounds = array<i64: 8, 512>}, {pipeline_mode = #tpu.pipeline_mode<synchronous>, transform_indices = @transform_4, window_bounds = array<i64: 512, 128>}, {pipeline_mode = #tpu.pipeline_mode<synchronous>, transform_indices = @transform_5, window_bounds = array<i64: 8, 8>}]} {
    %c0 = arith.constant 0 : index
    %0 = memref.load %arg1[%c0] : memref<1xf32, #tpu.memory_space<smem>>
    %c0_0 = arith.constant 0 : index
    %c0_1 = arith.constant 0 : index
    %1 = vector.load %arg4[%c0_0, %c0_1] : memref<8x512xbf16, #tpu.memory_space<vmem>>, vector<8x512xbf16>
    %c0_2 = arith.constant 0 : index
    %c0_3 = arith.constant 0 : index
    %2 = vector.load %arg5[%c0_2, %c0_3] : memref<512x128xbf16, #tpu.memory_space<vmem>>, vector<512x128xbf16>
    %cst = arith.constant dense<0.000000e+00> : vector<8x128xf32>
    %3 = tpu.matmul %1, %2, %cst {dimension_numbers = #tpu.dot_dimension_numbers<[1], [0], [0], [1], [0, 0, 1, 1], [], []>} : vector<8x512xbf16>, vector<512x128xbf16>, vector<8x128xf32> -> vector<8x128xf32>
    %4 = arith.mulf %3, %3 : vector<8x128xf32>
    %cst_4 = arith.constant dense<0.000000e+00> : vector<8xf32>
    %5 = vector.multi_reduction <add>, %4, %cst_4 [1] : vector<8x128xf32> to vector<8xf32>
    %6 = vector.shape_cast %5 : vector<8xf32> to vector<8x1xf32>
    %cst_5 = arith.constant 9.99999996E-13 : f32
    %7 = vector.broadcast %cst_5 : f32 to vector<8x1xf32>
    %8 = arith.addf %6, %7 : vector<8x1xf32>
    %9 = math.rsqrt %8 : vector<8x1xf32>
    %10 = vector.broadcast %9 : vector<8x1xf32> to vector<8x128xf32>
    %11 = arith.mulf %3, %10 : vector<8x128xf32>
    %12 = arith.truncf %11 : vector<8x128xf32> to vector<8x128xbf16>
    %c0_6 = arith.constant 0 : index
    %c0_7 = arith.constant 0 : index
    %13 = vector.load %arg2[%c0_6, %c0_7] : memref<8x1024xbf16, #tpu.memory_space<vmem>>, vector<8x1024xbf16>
    %c0_8 = arith.constant 0 : index
    %c0_9 = arith.constant 0 : index
    %14 = vector.load %arg3[%c0_8, %c0_9] : memref<1024x128xbf16, #tpu.memory_space<vmem>>, vector<1024x128xbf16>
    %cst_10 = arith.constant dense<0.000000e+00> : vector<8x128xf32>
    %15 = tpu.matmul %13, %14, %cst_10 {dimension_numbers = #tpu.dot_dimension_numbers<[1], [0], [0], [1], [0, 0, 1, 1], [], []>} : vector<8x1024xbf16>, vector<1024x128xbf16>, vector<8x128xf32> -> vector<8x128xf32>
    %16 = arith.mulf %15, %15 : vector<8x128xf32>
    %cst_11 = arith.constant dense<0.000000e+00> : vector<8xf32>
    %17 = vector.multi_reduction <add>, %16, %cst_11 [1] : vector<8x128xf32> to vector<8xf32>
    %18 = vector.shape_cast %17 : vector<8xf32> to vector<8x1xf32>
    %cst_12 = arith.constant 9.99999996E-13 : f32
    %19 = vector.broadcast %cst_12 : f32 to vector<8x1xf32>
    %20 = arith.addf %18, %19 : vector<8x1xf32>
    %21 = math.rsqrt %20 : vector<8x1xf32>
    %22 = vector.broadcast %21 : vector<8x1xf32> to vector<8x128xf32>
    %23 = arith.mulf %15, %22 : vector<8x128xf32>
    %24 = arith.truncf %23 : vector<8x128xf32> to vector<8x128xbf16>
    %cst_13 = arith.constant dense<0.000000e+00> : vector<8x8xf32>
    %25 = tpu.matmul %24, %12, %cst_13 {dimension_numbers = #tpu.dot_dimension_numbers<[1], [1], [0], [0], [0, 0, 1, 0], [], []>} : vector<8x128xbf16>, vector<8x128xbf16>, vector<8x8xf32> -> vector<8x8xf32>
    %26 = vector.broadcast %0 : f32 to vector<8x8xf32>
    %27 = arith.mulf %26, %25 : vector<8x8xf32>
    %c0_14 = arith.constant 0 : index
    %c0_15 = arith.constant 0 : index
    %28 = vector.load %arg6[%c0_14, %c0_15] : memref<8x8xf32, #tpu.memory_space<vmem>>, vector<8x8xf32>
    tpu.vector_store %arg6[%c0_14, %c0_15], %27 {strides = array<i32>} : memref<8x8xf32, #tpu.memory_space<vmem>>, vector<8x8xf32>,
    return
  }
  func.func @transform_0(%arg0: i32) -> i32 {
    %c0_i32 = arith.constant 0 : i32
    %c0_i32_0 = arith.constant 0 : i32
    return %c0_i32 : i32
  }
  func.func @transform_1(%arg0: i32) -> (i32, i32) {
    %c0_i32 = arith.constant 0 : i32
    %c0_i32_0 = arith.constant 0 : i32
    %c0_i32_1 = arith.constant 0 : i32
    return %c0_i32, %c0_i32_0 : i32, i32
  }
  func.func @transform_2(%arg0: i32) -> (i32, i32) {
    %c0_i32 = arith.constant 0 : i32
    %c0_i32_0 = arith.constant 0 : i32
    %c0_i32_1 = arith.constant 0 : i32
    return %c0_i32, %c0_i32_0 : i32, i32
  }
  func.func @transform_3(%arg0: i32) -> (i32, i32) {
    %c0_i32 = arith.constant 0 : i32
    %c0_i32_0 = arith.constant 0 : i32
    %c0_i32_1 = arith.constant 0 : i32
    return %c0_i32, %c0_i32_0 : i32, i32
  }
  func.func @transform_4(%arg0: i32) -> (i32, i32) {
    %c0_i32 = arith.constant 0 : i32
    %c0_i32_0 = arith.constant 0 : i32
    %c0_i32_1 = arith.constant 0 : i32
    return %c0_i32, %c0_i32_0 : i32, i32
  }
  func.func @transform_5(%arg0: i32) -> (i32, i32) {
    %c0_i32 = arith.constant 0 : i32
    %c0_i32_0 = arith.constant 0 : i32
    %c0_i32_1 = arith.constant 0 : i32
    return %c0_i32, %c0_i32_0 : i32, i32
  }
}

</mosaic_0001>

<llo_original>
// kernel: tpu_custom_call.1
$region0: #{tpu_custom_call.1}
  #allocation0 [shape = 'u32[]', space=smem, size = 0x4, offset = 0x4, fixed_abs, tag = 'smem constant byte address 0x4 - core index']
  #allocation1 [shape = 'u32[144,128]{1,0:T(1,128)}', space=vmem, size = 0x12000, scoped, tag = 'internal scratch']
  #allocation2 [shape = 'f32[1]{0:T(128)S(6)}', space=smem, size = 0x200, scoped, tag = 'scoped memory for tpu_custom_call.1']
  %s0 = inlined_call_operand.<no memory space> [shape: f32[1], index: 0, kind: input, shape index: {}]
  %s1 = inlined_call_operand.hbm [shape: bf16[8,1024], index: 1, kind: input, shape index: {}]
  %s2 = inlined_call_operand.hbm [shape: bf16[1024,128], index: 2, kind: input, shape index: {}]
  %s3 = inlined_call_operand.hbm [shape: bf16[8,512], index: 3, kind: input, shape index: {}]
  %s4 = inlined_call_operand.hbm [shape: bf16[512,128], index: 4, kind: input, shape index: {}]
  %s5 = inlined_call_operand.hbm [shape: f32[8,8], index: 5, kind: output, shape index: {}]
  %s6 = sld [smem:[#allocation0]]
  $region46: #{tpu_custom_call.1} parent=0
    _
  %s8 = ssub.s32 1, %s6
  %s9 = scalar_select 0, %s8, %s6
  %10 = sst [smem:[#allocation2]] %s0
  $region1: #{tpu_custom_call.1} parent=0
    #allocation3 [shape = 'u8[16384]{0}', space=vmem, size = 0x4000, scoped, tag = 'input window, operand 1, single buffered']
    #allocation4 [shape = 's32[1]{0}', space=sflag, size = 0x4, scoped, tag = 'scoped memory for tpu_custom_call.1']
    #allocation5 [shape = 's32[1]{0}', space=sflag, size = 0x4, scoped, tag = 'scoped memory for tpu_custom_call.1']
    #allocation6 [shape = 'u8[262144]{0}', space=vmem, size = 0x40000, scoped, tag = 'input window, operand 2, single buffered']
    #allocation7 [shape = 's32[1]{0}', space=sflag, size = 0x4, scoped, tag = 'scoped memory for tpu_custom_call.1']
    #allocation8 [shape = 'u8[8192]{0}', space=vmem, size = 0x2000, scoped, tag = 'input window, operand 3, single buffered']
    #allocation9 [shape = 'u8[131072]{0}', space=vmem, size = 0x20000, scoped, tag = 'input window, operand 4, single buffered']
    #allocation10 [shape = 's32[1]{0}', space=sflag, size = 0x4, scoped, tag = 'scoped memory for tpu_custom_call.1']
    #allocation11 [shape = 'u8[4096]{0}', space=vmem, size = 0x1000, scoped, tag = 'output window, operand 0, single buffered']
    %11 = vsyncpa [#allocation4], 0
    %12 = vsyncpa [#allocation7], 0
    %13 = vsyncpa [#allocation10], 0
    %14 = vsyncpa [#allocation5], 0
    // Predicated region
    $region2: #{tpu_custom_call.1} parent=1 // pred_check
      _
    $region3: #{tpu_custom_call.1} parent=1 // pred_check_branch
      %16 = sbr.rel (0) target = $region5
    $region4: #{tpu_custom_call.1} parent=1 // pred_region
      _
    $region5: #{tpu_custom_call.1} parent=1 // pred_fallthru
      _
    // Predicated region
    $region6: #{tpu_custom_call.1} parent=1 // pred_check
      _
    $region7: #{tpu_custom_call.1} parent=1 // pred_check_branch
      %18 = sbr.rel (0) target = $region9
    $region8: #{tpu_custom_call.1} parent=1 // pred_region
      %s20 = ssub.s32 512, 512
      %21 = vsyncadd [#allocation4], %s20
      %s23 = sshll.u32 [#allocation3], 4
      %s24 = int_to_ptr.vmem [resolvable:$true] %s23
      %26 = dma.hbm_to_vmem [thread:$0]  %s1, 512, %s24, [#allocation4]
    $region9: #{tpu_custom_call.1} parent=1 // pred_fallthru
      _
    // Predicated region
    $region10: #{tpu_custom_call.1} parent=1 // pred_check
      _
    $region11: #{tpu_custom_call.1} parent=1 // pred_check_branch
      %28 = sbr.rel (0) target = $region13
    $region12: #{tpu_custom_call.1} parent=1 // pred_region
      %s30 = ssub.s32 8192, 8192
      %31 = vsyncadd [#allocation7], %s30
      %s32 = sshll.u32 [#allocation6], 4
      %s33 = int_to_ptr.vmem [resolvable:$true] %s32
      %38 = dma.hbm_to_vmem [thread:$0]  %s2, 8192, %s33, [#allocation7], 64, 64, 4
    $region13: #{tpu_custom_call.1} parent=1 // pred_fallthru
      _
    // Predicated region
    $region14: #{tpu_custom_call.1} parent=1 // pred_check
      _
    $region15: #{tpu_custom_call.1} parent=1 // pred_check_branch
      %40 = sbr.rel (0) target = $region17
    $region16: #{tpu_custom_call.1} parent=1 // pred_region
      %s42 = ssub.s32 256, 256
      %43 = vsyncadd [#allocation7], %s42
      %s45 = sshll.u32 [#allocation8], 4
      %s46 = int_to_ptr.vmem [resolvable:$true] %s45
      %48 = dma.hbm_to_vmem [thread:$0]  %s3, 256, %s46, [#allocation7]
    $region17: #{tpu_custom_call.1} parent=1 // pred_fallthru
      _
    // Predicated region
    $region18: #{tpu_custom_call.1} parent=1 // pred_check
      _
    $region19: #{tpu_custom_call.1} parent=1 // pred_check_branch
      %50 = sbr.rel (0) target = $region21
    $region20: #{tpu_custom_call.1} parent=1 // pred_region
      %s52 = ssub.s32 4096, 4096
      %53 = vsyncadd [#allocation10], %s52
      %s54 = sshll.u32 [#allocation9], 4
      %s55 = int_to_ptr.vmem [resolvable:$true] %s54
      %60 = dma.hbm_to_vmem [thread:$0]  %s4, 4096, %s55, [#allocation10], 64, 64, 4
    $region21: #{tpu_custom_call.1} parent=1 // pred_fallthru
      _
    // Predicated region
    $region22: #{tpu_custom_call.1} parent=1 // pred_check
      _
    $region23: #{tpu_custom_call.1} parent=1 // pred_check_branch
      %62 = sbr.rel (0) target = $region25
    $region24: #{tpu_custom_call.1} parent=1 // pred_region
      %63 = dma.done [#allocation4], 512
    $region25: #{tpu_custom_call.1} parent=1 // pred_fallthru
      _
    // Predicated region
    $region26: #{tpu_custom_call.1} parent=1 // pred_check
      _
    $region27: #{tpu_custom_call.1} parent=1 // pred_check_branch
      %65 = sbr.rel (0) target = $region29
    $region28: #{tpu_custom_call.1} parent=1 // pred_region
      %66 = dma.done [#allocation7], 8192
    $region29: #{tpu_custom_call.1} parent=1 // pred_fallthru
      _
    // Predicated region
    $region30: #{tpu_custom_call.1} parent=1 // pred_check
      _
    $region31: #{tpu_custom_call.1} parent=1 // pred_check_branch
      %68 = sbr.rel (0) target = $region33
    $region32: #{tpu_custom_call.1} parent=1 // pred_region
      %69 = dma.done [#allocation7], 256
    $region33: #{tpu_custom_call.1} parent=1 // pred_fallthru
      _
    // Predicated region
    $region34: #{tpu_custom_call.1} parent=1 // pred_check
      _
    $region35: #{tpu_custom_call.1} parent=1 // pred_check_branch
      %71 = sbr.rel (0) target = $region37
    $region36: #{tpu_custom_call.1} parent=1 // pred_region
      %72 = dma.done [#allocation10], 4096
    $region37: #{tpu_custom_call.1} parent=1 // pred_fallthru
      _
    %s74 = sld [smem:[#allocation2]]
    %v75 = vld [vmem:[#allocation8] sm:$0xff]
    %v76 = vld [vmem:[#allocation8 + $0x8] sm:$0xff]
    %v77 = vld [vmem:[#allocation9] sm:$0xf]
    %v78 = vld [vmem:[#allocation9 + $0x4] sm:$0xf]
    %v79 = vld [vmem:[#allocation9 + $0x8] sm:$0xf]
    %v80 = vld [vmem:[#allocation9 + $0xc] sm:$0xf]
    %v81 = vld [vmem:[#allocation9 + $0x10] sm:$0xf]
    %v82 = vld [vmem:[#allocation9 + $0x14] sm:$0xf]
    %v83 = vld [vmem:[#allocation9 + $0x18] sm:$0xf]
    %v84 = vld [vmem:[#allocation9 + $0x1c] sm:$0xf]
    %v85 = vld [vmem:[#allocation9 + $0x20] sm:$0xf]
    %v86 = vld [vmem:[#allocation9 + $0x24] sm:$0xf]
    %v87 = vld [vmem:[#allocation9 + $0x28] sm:$0xf]
    %v88 = vld [vmem:[#allocation9 + $0x2c] sm:$0xf]
    %v89 = vld [vmem:[#allocation9 + $0x30] sm:$0xf]
    %v90 = vld [vmem:[#allocation9 + $0x34] sm:$0xf]
    %v91 = vld [vmem:[#allocation9 + $0x38] sm:$0xf]
    %v92 = vld [vmem:[#allocation9 + $0x3c] sm:$0xf]
    %v93 = vld [vmem:[#allocation9 + $0x40] sm:$0xf]
    %v94 = vld [vmem:[#allocation9 + $0x44] sm:$0xf]
    %v95 = vld [vmem:[#allocation9 + $0x48] sm:$0xf]
    %v96 = vld [vmem:[#allocation9 + $0x4c] sm:$0xf]
    %v97 = vld [vmem:[#allocation9 + $0x50] sm:$0xf]
    %v98 = vld [vmem:[#allocation9 + $0x54] sm:$0xf]
    %v99 = vld [vmem:[#allocation9 + $0x58] sm:$0xf]
    %v100 = vld [vmem:[#allocation9 + $0x5c] sm:$0xf]
    %v101 = vld [vmem:[#allocation9 + $0x60] sm:$0xf]
    %v102 = vld [vmem:[#allocation9 + $0x64] sm:$0xf]
    %v103 = vld [vmem:[#allocation9 + $0x68] sm:$0xf]
    %v104 = vld [vmem:[#allocation9 + $0x6c] sm:$0xf]
    %v105 = vld [vmem:[#allocation9 + $0x70] sm:$0xf]
    %v106 = vld [vmem:[#allocation9 + $0x74] sm:$0xf]
    %v107 = vld [vmem:[#allocation9 + $0x78] sm:$0xf]
    %v108 = vld [vmem:[#allocation9 + $0x7c] sm:$0xf]
    %v109 = vld [vmem:[#allocation9 + $0x80] sm:$0xf]
    %v110 = vld [vmem:[#allocation9 + $0x84] sm:$0xf]
    %v111 = vld [vmem:[#allocation9 + $0x88] sm:$0xf]
    %v112 = vld [vmem:[#allocation9 + $0x8c] sm:$0xf]
    %v113 = vld [vmem:[#allocation9 + $0x90] sm:$0xf]
    %v114 = vld [vmem:[#allocation9 + $0x94] sm:$0xf]
    %v115 = vld [vmem:[#allocation9 + $0x98] sm:$0xf]
    %v116 = vld [vmem:[#allocation9 + $0x9c] sm:$0xf]
    %v117 = vld [vmem:[#allocation9 + $0xa0] sm:$0xf]
    %v118 = vld [vmem:[#allocation9 + $0xa4] sm:$0xf]
    %v119 = vld [vmem:[#allocation9 + $0xa8] sm:$0xf]
    %v120 = vld [vmem:[#allocation9 + $0xac] sm:$0xf]
    %v121 = vld [vmem:[#allocation9 + $0xb0] sm:$0xf]
    %v122 = vld [vmem:[#allocation9 + $0xb4] sm:$0xf]
    %v123 = vld [vmem:[#allocation9 + $0xb8] sm:$0xf]
    %v124 = vld [vmem:[#allocation9 + $0xbc] sm:$0xf]
    %v125 = vld [vmem:[#allocation9 + $0xc0] sm:$0xf]
    %v126 = vld [vmem:[#allocation9 + $0xc4] sm:$0xf]
    %v127 = vld [vmem:[#allocation9 + $0xc8] sm:$0xf]
    %v128 = vld [vmem:[#allocation9 + $0xcc] sm:$0xf]
    %v129 = vld [vmem:[#allocation9 + $0xd0] sm:$0xf]
    %v130 = vld [vmem:[#allocation9 + $0xd4] sm:$0xf]
    %v131 = vld [vmem:[#allocation9 + $0xd8] sm:$0xf]
    %v132 = vld [vmem:[#allocation9 + $0xdc] sm:$0xf]
    %v133 = vld [vmem:[#allocation9 + $0xe0] sm:$0xf]
    %v134 = vld [vmem:[#allocation9 + $0xe4] sm:$0xf]
    %v135 = vld [vmem:[#allocation9 + $0xe8] sm:$0xf]
    %v136 = vld [vmem:[#allocation9 + $0xec] sm:$0xf]
    %v137 = vld [vmem:[#allocation9 + $0xf0] sm:$0xf]
    %v138 = vld [vmem:[#allocation9 + $0xf4] sm:$0xf]
    %v139 = vld [vmem:[#allocation9 + $0xf8] sm:$0xf]
    %v140 = vld [vmem:[#allocation9 + $0xfc] sm:$0xf]
    %v143 = vunpack.c.l.b16 %v75
    %v144 = vunpack.c.h.b16 %v75
    %v145 = vunpack.c.l.b16 %v76
    %v146 = vunpack.c.h.b16 %v76
    %v147 = vpack.c.b16 %v143, %v143
    %v148 = vpack.c.b16 %v144, %v144
    %v149 = vpack.c.b16 %v145, %v145
    %v150 = vpack.c.b16 %v146, %v146
    %v219 = vunpack.c.l.b16 %v77
    %v220 = vunpack.c.l.b16 %v78
    %v221 = vunpack.c.l.b16 %v79
    %v222 = vunpack.c.l.b16 %v80
    %v223 = vunpack.c.l.b16 %v81
    %v224 = vunpack.c.l.b16 %v82
    %v225 = vunpack.c.l.b16 %v83
    %v226 = vunpack.c.l.b16 %v84
    %v227 = vunpack.c.l.b16 %v85
    %v228 = vunpack.c.l.b16 %v86
    %v229 = vunpack.c.l.b16 %v87
    %v230 = vunpack.c.l.b16 %v88
    %v231 = vunpack.c.l.b16 %v89
    %v232 = vunpack.c.l.b16 %v90
    %v233 = vunpack.c.l.b16 %v91
    %v234 = vunpack.c.l.b16 %v92
    %v235 = vunpack.c.l.b16 %v93
    %v236 = vunpack.c.l.b16 %v94
    %v237 = vunpack.c.l.b16 %v95
    %v238 = vunpack.c.l.b16 %v96
    %v239 = vunpack.c.l.b16 %v97
    %v240 = vunpack.c.l.b16 %v98
    %v241 = vunpack.c.l.b16 %v99
    %v242 = vunpack.c.l.b16 %v100
    %v243 = vunpack.c.l.b16 %v101
    %v244 = vunpack.c.l.b16 %v102
    %v245 = vunpack.c.l.b16 %v103
    %v246 = vunpack.c.l.b16 %v104
    %v247 = vunpack.c.l.b16 %v105
    %v248 = vunpack.c.l.b16 %v106
    %v249 = vunpack.c.l.b16 %v107
    %v250 = vunpack.c.l.b16 %v108
    %v251 = vunpack.c.l.b16 %v109
    %v252 = vunpack.c.l.b16 %v110
    %v253 = vunpack.c.l.b16 %v111
    %v254 = vunpack.c.l.b16 %v112
    %v255 = vunpack.c.l.b16 %v113
    %v256 = vunpack.c.l.b16 %v114
    %v257 = vunpack.c.l.b16 %v115
    %v258 = vunpack.c.l.b16 %v116
    %v259 = vunpack.c.l.b16 %v117
    %v260 = vunpack.c.l.b16 %v118
    %v261 = vunpack.c.l.b16 %v119
    %v262 = vunpack.c.l.b16 %v120
    %v263 = vunpack.c.l.b16 %v121
    %v264 = vunpack.c.l.b16 %v122
    %v265 = vunpack.c.l.b16 %v123
    %v266 = vunpack.c.l.b16 %v124
    %v267 = vunpack.c.l.b16 %v125
    %v268 = vunpack.c.l.b16 %v126
    %v269 = vunpack.c.l.b16 %v127
    %v270 = vunpack.c.l.b16 %v128
    %v271 = vunpack.c.l.b16 %v129
    %v272 = vunpack.c.l.b16 %v130
    %v273 = vunpack.c.l.b16 %v131
    %v274 = vunpack.c.l.b16 %v132
    %v275 = vunpack.c.l.b16 %v133
    %v276 = vunpack.c.l.b16 %v134
    %v277 = vunpack.c.l.b16 %v135
    %v278 = vunpack.c.l.b16 %v136
    %v279 = vunpack.c.l.b16 %v137
    %v280 = vunpack.c.l.b16 %v138
    %v281 = vunpack.c.l.b16 %v139
    %v282 = vunpack.c.l.b16 %v140
    %v283 = vpack.c.b16 %v220, %v219
    %v284 = vpack.c.b16 %v222, %v221
    %v285 = vpack.c.b16 %v224, %v223
    %v286 = vpack.c.b16 %v226, %v225
    %v287 = vpack.c.b16 %v228, %v227
    %v288 = vpack.c.b16 %v230, %v229
    %v289 = vpack.c.b16 %v232, %v231
    %v290 = vpack.c.b16 %v234, %v233
    %v291 = vpack.c.b16 %v236, %v235
    %v292 = vpack.c.b16 %v238, %v237
    %v293 = vpack.c.b16 %v240, %v239
    %v294 = vpack.c.b16 %v242, %v241
    %v295 = vpack.c.b16 %v244, %v243
    %v296 = vpack.c.b16 %v246, %v245
    %v297 = vpack.c.b16 %v248, %v247
    %v298 = vpack.c.b16 %v250, %v249
    %v299 = vpack.c.b16 %v252, %v251
    %v300 = vpack.c.b16 %v254, %v253
    %v301 = vpack.c.b16 %v256, %v255
    %v302 = vpack.c.b16 %v258, %v257
    %v303 = vpack.c.b16 %v260, %v259
    %v304 = vpack.c.b16 %v262, %v261
    %v305 = vpack.c.b16 %v264, %v263
    %v306 = vpack.c.b16 %v266, %v265
    %v307 = vpack.c.b16 %v268, %v267
    %v308 = vpack.c.b16 %v270, %v269
    %v309 = vpack.c.b16 %v272, %v271
    %v310 = vpack.c.b16 %v274, %v273
    %v311 = vpack.c.b16 %v276, %v275
    %v312 = vpack.c.b16 %v278, %v277
    %v313 = vpack.c.b16 %v280, %v279
    %v314 = vpack.c.b16 %v282, %v281
    %347 = vmatprep.subr.bf16.mxu0 0
    %348 = vmatpush1.bf16.msra.mxu0 %v290
    %349 = vmatprep.subr.bf16.mxu0 0
    %350 = vmatpush1.bf16.msra.mxu0 %v289
    %351 = vmatprep.subr.bf16.mxu0 0
    %352 = vmatpush1.bf16.msra.mxu0 %v288
    %353 = vmatprep.subr.bf16.mxu0 0
    %354 = vmatpush1.bf16.msra.mxu0 %v287
    %355 = vmatprep.subr.bf16.mxu0 0
    %356 = vmatpush1.bf16.msra.mxu0 %v286
    %357 = vmatprep.subr.bf16.mxu0 0
    %358 = vmatpush1.bf16.msra.mxu0 %v285
    %359 = vmatprep.subr.bf16.mxu0 0
    %360 = vmatpush1.bf16.msra.mxu0 %v284
    %361 = vmatprep.subr.bf16.mxu0 0
    %362 = vmatpush1.bf16.msra.mxu0 %v283
    %363 = vmatprep.subr.bf16.mxu0 0
    %364 = vmatpush2.bf16.msra.mxu0 %v298
    %365 = vmatprep.subr.bf16.mxu0 0
    %366 = vmatpush2.bf16.msra.mxu0 %v297
    %367 = vmatprep.subr.bf16.mxu0 0
    %368 = vmatpush2.bf16.msra.mxu0 %v296
    %369 = vmatprep.subr.bf16.mxu0 0
    %370 = vmatpush2.bf16.msra.mxu0 %v295
    %371 = vmatprep.subr.bf16.mxu0 0
    %372 = vmatpush2.bf16.msra.mxu0 %v294
    %373 = vmatprep.subr.bf16.mxu0 0
    %374 = vmatpush2.bf16.msra.mxu0 %v293
    %375 = vmatprep.subr.bf16.mxu0 0
    %376 = vmatpush2.bf16.msra.mxu0 %v292
    %377 = vmatprep.subr.bf16.mxu0 0
    %378 = vmatpush2.bf16.msra.mxu0 %v291
    %379 = vmatprep.mubr.bf16.mxu0 %v148
    %380 = vmatmul.mubr.bf16.gmra.mxu0 %v147
    %v381 = vpop.f32.mrf.mxu0
    %v382 = vadd.f32 0.0, %v381
    %v383 = vpop.f32.mrf.mxu0
    %v384 = vpop.f32.mrf.mxu0
    %v385 = vpop.f32.mrf.mxu0
    %386 = vdwg.mxu0
    %387 = vmatprep.subr.bf16.mxu0 0
    %388 = vmatpush1.bf16.msra.mxu0 %v306
    %389 = vmatprep.subr.bf16.mxu0 0
    %390 = vmatpush1.bf16.msra.mxu0 %v305
    %391 = vmatprep.subr.bf16.mxu0 0
    %392 = vmatpush1.bf16.msra.mxu0 %v304
    %393 = vmatprep.subr.bf16.mxu0 0
    %394 = vmatpush1.bf16.msra.mxu0 %v303
    %395 = vmatprep.subr.bf16.mxu0 0
    %396 = vmatpush1.bf16.msra.mxu0 %v302
    %397 = vmatprep.subr.bf16.mxu0 0
    %398 = vmatpush1.bf16.msra.mxu0 %v301
    %399 = vmatprep.subr.bf16.mxu0 0
    %400 = vmatpush1.bf16.msra.mxu0 %v300
    %401 = vmatprep.subr.bf16.mxu0 0
    %402 = vmatpush1.bf16.msra.mxu0 %v299
    %403 = vmatprep.subr.bf16.mxu0 0
    %404 = vmatpush2.bf16.msra.mxu0 %v314
    %405 = vmatprep.subr.bf16.mxu0 0
    %406 = vmatpush2.bf16.msra.mxu0 %v313
    %407 = vmatprep.subr.bf16.mxu0 0
    %408 = vmatpush2.bf16.msra.mxu0 %v312
    %409 = vmatprep.subr.bf16.mxu0 0
    %410 = vmatpush2.bf16.msra.mxu0 %v311
    %411 = vmatprep.subr.bf16.mxu0 0
    %412 = vmatpush2.bf16.msra.mxu0 %v310
    %413 = vmatprep.subr.bf16.mxu0 0
    %414 = vmatpush2.bf16.msra.mxu0 %v309
    %415 = vmatprep.subr.bf16.mxu0 0
    %416 = vmatpush2.bf16.msra.mxu0 %v308
    %417 = vmatprep.subr.bf16.mxu0 0
    %418 = vmatpush2.bf16.msra.mxu0 %v307
    %419 = vmatprep.mubr.bf16.mxu0 %v150
    %420 = vmatmul.mubr.bf16.gmra.mxu0 %v149
    %v421 = vpop.f32.mrf.mxu0
    %v422 = vadd.f32 %v382, %v421
    %v423 = vpop.f32.mrf.mxu0
    %v424 = vpop.f32.mrf.mxu0
    %v425 = vpop.f32.mrf.mxu0
    %426 = vdwg.mxu0
    %v427 = vmul.f32 %v422, %v422
    %428 = vadd.xlane.f32.xlu0 %v427
    %v429 = vpop.xlane.xlu0 %428
    %v430 = vadd.f32 %v429, 1e-12
    %v431 = vrsqrt.pop %v430
    %v432 = vmul.f32 %v422, %v431
    %v433 = vpack.c.bf16 %v432, %v432
    %v434 = vld [vmem:[#allocation3] sm:$0xff]
    %v435 = vld [vmem:[#allocation3 + $0x8] sm:$0xff]
    %v436 = vld [vmem:[#allocation3 + $0x10] sm:$0xff]
    %v437 = vld [vmem:[#allocation3 + $0x18] sm:$0xff]
    %v438 = vld [vmem:[#allocation6] sm:$0xf]
    %v439 = vld [vmem:[#allocation6 + $0x4] sm:$0xf]
    %v440 = vld [vmem:[#allocation6 + $0x8] sm:$0xf]
    %v441 = vld [vmem:[#allocation6 + $0xc] sm:$0xf]
    %v442 = vld [vmem:[#allocation6 + $0x10] sm:$0xf]
    %v443 = vld [vmem:[#allocation6 + $0x14] sm:$0xf]
    %v444 = vld [vmem:[#allocation6 + $0x18] sm:$0xf]
    %v445 = vld [vmem:[#allocation6 + $0x1c] sm:$0xf]
    %v446 = vld [vmem:[#allocation6 + $0x20] sm:$0xf]
    %v447 = vld [vmem:[#allocation6 + $0x24] sm:$0xf]
    %v448 = vld [vmem:[#allocation6 + $0x28] sm:$0xf]
    %v449 = vld [vmem:[#allocation6 + $0x2c] sm:$0xf]
    %v450 = vld [vmem:[#allocation6 + $0x30] sm:$0xf]
    %v451 = vld [vmem:[#allocation6 + $0x34] sm:$0xf]
    %v452 = vld [vmem:[#allocation6 + $0x38] sm:$0xf]
    %v453 = vld [vmem:[#allocation6 + $0x3c] sm:$0xf]
    %v454 = vld [vmem:[#allocation6 + $0x40] sm:$0xf]
    %v455 = vld [vmem:[#allocation6 + $0x44] sm:$0xf]
    %v456 = vld [vmem:[#allocation6 + $0x48] sm:$0xf]
    %v457 = vld [vmem:[#allocation6 + $0x4c] sm:$0xf]
    %v458 = vld [vmem:[#allocation6 + $0x50] sm:$0xf]
    %v459 = vld [vmem:[#allocation6 + $0x54] sm:$0xf]
    %v460 = vld [vmem:[#allocation6 + $0x58] sm:$0xf]
    %v461 = vld [vmem:[#allocation6 + $0x5c] sm:$0xf]
    %v462 = vld [vmem:[#allocation6 + $0x60] sm:$0xf]
    %v463 = vld [vmem:[#allocation6 + $0x64] sm:$0xf]
    %v464 = vld [vmem:[#allocation6 + $0x68] sm:$0xf]
    %v465 = vld [vmem:[#allocation6 + $0x6c] sm:$0xf]
    %v466 = vld [vmem:[#allocation6 + $0x70] sm:$0xf]
    %v467 = vld [vmem:[#allocation6 + $0x74] sm:$0xf]
    %v468 = vld [vmem:[#allocation6 + $0x78] sm:$0xf]
    %v469 = vld [vmem:[#allocation6 + $0x7c] sm:$0xf]
    %v470 = vld [vmem:[#allocation6 + $0x80] sm:$0xf]
    %v471 = vld [vmem:[#allocation6 + $0x84] sm:$0xf]
    %v472 = vld [vmem:[#allocation6 + $0x88] sm:$0xf]
    %v473 = vld [vmem:[#allocation6 + $0x8c] sm:$0xf]
    %v474 = vld [vmem:[#allocation6 + $0x90] sm:$0xf]
    %v475 = vld [vmem:[#allocation6 + $0x94] sm:$0xf]
    %v476 = vld [vmem:[#allocation6 + $0x98] sm:$0xf]
    %v477 = vld [vmem:[#allocation6 + $0x9c] sm:$0xf]
    %v478 = vld [vmem:[#allocation6 + $0xa0] sm:$0xf]
    %v479 = vld [vmem:[#allocation6 + $0xa4] sm:$0xf]
    %v480 = vld [vmem:[#allocation6 + $0xa8] sm:$0xf]
    %v481 = vld [vmem:[#allocation6 + $0xac] sm:$0xf]
    %v482 = vld [vmem:[#allocation6 + $0xb0] sm:$0xf]
    %v483 = vld [vmem:[#allocation6 + $0xb4] sm:$0xf]
    %v484 = vld [vmem:[#allocation6 + $0xb8] sm:$0xf]
    %v485 = vld [vmem:[#allocation6 + $0xbc] sm:$0xf]
    %v486 = vld [vmem:[#allocation6 + $0xc0] sm:$0xf]
    %v487 = vld [vmem:[#allocation6 + $0xc4] sm:$0xf]
    %v488 = vld [vmem:[#allocation6 + $0xc8] sm:$0xf]
    %v489 = vld [vmem:[#allocation6 + $0xcc] sm:$0xf]
    %v490 = vld [vmem:[#allocation6 + $0xd0] sm:$0xf]
    %v491 = vld [vmem:[#allocation6 + $0xd4] sm:$0xf]
    %v492 = vld [vmem:[#allocation6 + $0xd8] sm:$0xf]
    %v493 = vld [vmem:[#allocation6 + $0xdc] sm:$0xf]
    %v494 = vld [vmem:[#allocation6 + $0xe0] sm:$0xf]
    %v495 = vld [vmem:[#allocation6 + $0xe4] sm:$0xf]
    %v496 = vld [vmem:[#allocation6 + $0xe8] sm:$0xf]
    %v497 = vld [vmem:[#allocation6 + $0xec] sm:$0xf]
    %v498 = vld [vmem:[#allocation6 + $0xf0] sm:$0xf]
    %v499 = vld [vmem:[#allocation6 + $0xf4] sm:$0xf]
    %v500 = vld [vmem:[#allocation6 + $0xf8] sm:$0xf]
    %v501 = vld [vmem:[#allocation6 + $0xfc] sm:$0xf]
    %v502 = vld [vmem:[#allocation6 + $0x100] sm:$0xf]
    %v503 = vld [vmem:[#allocation6 + $0x104] sm:$0xf]
    %v504 = vld [vmem:[#allocation6 + $0x108] sm:$0xf]
    %v505 = vld [vmem:[#allocation6 + $0x10c] sm:$0xf]
    %v506 = vld [vmem:[#allocation6 + $0x110] sm:$0xf]
    %v507 = vld [vmem:[#allocation6 + $0x114] sm:$0xf]
    %v508 = vld [vmem:[#allocation6 + $0x118] sm:$0xf]
    %v509 = vld [vmem:[#allocation6 + $0x11c] sm:$0xf]
    %v510 = vld [vmem:[#allocation6 + $0x120] sm:$0xf]
    %v511 = vld [vmem:[#allocation6 + $0x124] sm:$0xf]
    %v512 = vld [vmem:[#allocation6 + $0x128] sm:$0xf]
    %v513 = vld [vmem:[#allocation6 + $0x12c] sm:$0xf]
    %v514 = vld [vmem:[#allocation6 + $0x130] sm:$0xf]
    %v515 = vld [vmem:[#allocation6 + $0x134] sm:$0xf]
    %v516 = vld [vmem:[#allocation6 + $0x138] sm:$0xf]
    %v517 = vld [vmem:[#allocation6 + $0x13c] sm:$0xf]
    %v518 = vld [vmem:[#allocation6 + $0x140] sm:$0xf]
    %v519 = vld [vmem:[#allocation6 + $0x144] sm:$0xf]
    %v520 = vld [vmem:[#allocation6 + $0x148] sm:$0xf]
    %v521 = vld [vmem:[#allocation6 + $0x14c] sm:$0xf]
    %v522 = vld [vmem:[#allocation6 + $0x150] sm:$0xf]
    %v523 = vld [vmem:[#allocation6 + $0x154] sm:$0xf]
    %v524 = vld [vmem:[#allocation6 + $0x158] sm:$0xf]
    %v525 = vld [vmem:[#allocation6 + $0x15c] sm:$0xf]
    %v526 = vld [vmem:[#allocation6 + $0x160] sm:$0xf]
    %v527 = vld [vmem:[#allocation6 + $0x164] sm:$0xf]
    %v528 = vld [vmem:[#allocation6 + $0x168] sm:$0xf]
    %v529 = vld [vmem:[#allocation6 + $0x16c] sm:$0xf]
    %v530 = vld [vmem:[#allocation6 + $0x170] sm:$0xf]
    %v531 = vld [vmem:[#allocation6 + $0x174] sm:$0xf]
    %v532 = vld [vmem:[#allocation6 + $0x178] sm:$0xf]
    %v533 = vld [vmem:[#allocation6 + $0x17c] sm:$0xf]
    %v534 = vld [vmem:[#allocation6 + $0x180] sm:$0xf]
    %v535 = vld [vmem:[#allocation6 + $0x184] sm:$0xf]
    %v536 = vld [vmem:[#allocation6 + $0x188] sm:$0xf]
    %v537 = vld [vmem:[#allocation6 + $0x18c] sm:$0xf]
    %v538 = vld [vmem:[#allocation6 + $0x190] sm:$0xf]
    %v539 = vld [vmem:[#allocation6 + $0x194] sm:$0xf]
    %v540 = vld [vmem:[#allocation6 + $0x198] sm:$0xf]
    %v541 = vld [vmem:[#allocation6 + $0x19c] sm:$0xf]
    %v542 = vld [vmem:[#allocation6 + $0x1a0] sm:$0xf]
    %v543 = vld [vmem:[#allocation6 + $0x1a4] sm:$0xf]
    %v544 = vld [vmem:[#allocation6 + $0x1a8] sm:$0xf]
    %v545 = vld [vmem:[#allocation6 + $0x1ac] sm:$0xf]
    %v546 = vld [vmem:[#allocation6 + $0x1b0] sm:$0xf]
    %v547 = vld [vmem:[#allocation6 + $0x1b4] sm:$0xf]
    %v548 = vld [vmem:[#allocation6 + $0x1b8] sm:$0xf]
    %v549 = vld [vmem:[#allocation6 + $0x1bc] sm:$0xf]
    %v550 = vld [vmem:[#allocation6 + $0x1c0] sm:$0xf]
    %v551 = vld [vmem:[#allocation6 + $0x1c4] sm:$0xf]
    %v552 = vld [vmem:[#allocation6 + $0x1c8] sm:$0xf]
    %v553 = vld [vmem:[#allocation6 + $0x1cc] sm:$0xf]
    %v554 = vld [vmem:[#allocation6 + $0x1d0] sm:$0xf]
    %v555 = vld [vmem:[#allocation6 + $0x1d4] sm:$0xf]
    %v556 = vld [vmem:[#allocation6 + $0x1d8] sm:$0xf]
    %v557 = vld [vmem:[#allocation6 + $0x1dc] sm:$0xf]
    %v558 = vld [vmem:[#allocation6 + $0x1e0] sm:$0xf]
    %v559 = vld [vmem:[#allocation6 + $0x1e4] sm:$0xf]
    %v560 = vld [vmem:[#allocation6 + $0x1e8] sm:$0xf]
    %v561 = vld [vmem:[#allocation6 + $0x1ec] sm:$0xf]
    %v562 = vld [vmem:[#allocation6 + $0x1f0] sm:$0xf]
    %v563 = vld [vmem:[#allocation6 + $0x1f4] sm:$0xf]
    %v564 = vld [vmem:[#allocation6 + $0x1f8] sm:$0xf]
    %v565 = vld [vmem:[#allocation6 + $0x1fc] sm:$0xf]
    %v570 = vunpack.c.l.b16 %v434
    %v571 = vunpack.c.h.b16 %v434
    %v572 = vunpack.c.l.b16 %v435
    %v573 = vunpack.c.h.b16 %v435
    %v574 = vunpack.c.l.b16 %v436
    %v575 = vunpack.c.h.b16 %v436
    %v576 = vunpack.c.l.b16 %v437
    %v577 = vunpack.c.h.b16 %v437
    %v578 = vpack.c.b16 %v570, %v570
    %v579 = vpack.c.b16 %v571, %v571
    %v580 = vpack.c.b16 %v572, %v572
    %v581 = vpack.c.b16 %v573, %v573
    %v582 = vpack.c.b16 %v574, %v574
    %v583 = vpack.c.b16 %v575, %v575
    %v584 = vpack.c.b16 %v576, %v576
    %v585 = vpack.c.b16 %v577, %v577
    %v722 = vunpack.c.l.b16 %v438
    %v723 = vunpack.c.l.b16 %v439
    %v724 = vunpack.c.l.b16 %v440
    %v725 = vunpack.c.l.b16 %v441
    %v726 = vunpack.c.l.b16 %v442
    %v727 = vunpack.c.l.b16 %v443
    %v728 = vunpack.c.l.b16 %v444
    %v729 = vunpack.c.l.b16 %v445
    %v730 = vunpack.c.l.b16 %v446
    %v731 = vunpack.c.l.b16 %v447
    %v732 = vunpack.c.l.b16 %v448
    %v733 = vunpack.c.l.b16 %v449
    %v734 = vunpack.c.l.b16 %v450
    %v735 = vunpack.c.l.b16 %v451
    %v736 = vunpack.c.l.b16 %v452
    %v737 = vunpack.c.l.b16 %v453
    %v738 = vunpack.c.l.b16 %v454
    %v739 = vunpack.c.l.b16 %v455
    %v740 = vunpack.c.l.b16 %v456
    %v741 = vunpack.c.l.b16 %v457
    %v742 = vunpack.c.l.b16 %v458
    %v743 = vunpack.c.l.b16 %v459
    %v744 = vunpack.c.l.b16 %v460
    %v745 = vunpack.c.l.b16 %v461
    %v746 = vunpack.c.l.b16 %v462
    %v747 = vunpack.c.l.b16 %v463
    %v748 = vunpack.c.l.b16 %v464
    %v749 = vunpack.c.l.b16 %v465
    %v750 = vunpack.c.l.b16 %v466
    %v751 = vunpack.c.l.b16 %v467
    %v752 = vunpack.c.l.b16 %v468
    %v753 = vunpack.c.l.b16 %v469
    %v754 = vunpack.c.l.b16 %v470
    %v755 = vunpack.c.l.b16 %v471
    %v756 = vunpack.c.l.b16 %v472
    %v757 = vunpack.c.l.b16 %v473
    %v758 = vunpack.c.l.b16 %v474
    %v759 = vunpack.c.l.b16 %v475
    %v760 = vunpack.c.l.b16 %v476
    %v761 = vunpack.c.l.b16 %v477
    %v762 = vunpack.c.l.b16 %v478
    %v763 = vunpack.c.l.b16 %v479
    %v764 = vunpack.c.l.b16 %v480
    %v765 = vunpack.c.l.b16 %v481
    %v766 = vunpack.c.l.b16 %v482
    %v767 = vunpack.c.l.b16 %v483
    %v768 = vunpack.c.l.b16 %v484
    %v769 = vunpack.c.l.b16 %v485
    %v770 = vunpack.c.l.b16 %v486
    %v771 = vunpack.c.l.b16 %v487
    %v772 = vunpack.c.l.b16 %v488
    %v773 = vunpack.c.l.b16 %v489
    %v774 = vunpack.c.l.b16 %v490
    %v775 = vunpack.c.l.b16 %v491
    %v776 = vunpack.c.l.b16 %v492
    %v777 = vunpack.c.l.b16 %v493
    %v778 = vunpack.c.l.b16 %v494
    %v779 = vunpack.c.l.b16 %v495
    %v780 = vunpack.c.l.b16 %v496
    %v781 = vunpack.c.l.b16 %v497
    %v782 = vunpack.c.l.b16 %v498
    %v783 = vunpack.c.l.b16 %v499
    %v784 = vunpack.c.l.b16 %v500
    %v785 = vunpack.c.l.b16 %v501
    %v786 = vunpack.c.l.b16 %v502
    %v787 = vunpack.c.l.b16 %v503
    %v788 = vunpack.c.l.b16 %v504
    %v789 = vunpack.c.l.b16 %v505
    %v790 = vunpack.c.l.b16 %v506
    %v791 = vunpack.c.l.b16 %v507
    %v792 = vunpack.c.l.b16 %v508
    %v793 = vunpack.c.l.b16 %v509
    %v794 = vunpack.c.l.b16 %v510
    %v795 = vunpack.c.l.b16 %v511
    %v796 = vunpack.c.l.b16 %v512
    %v797 = vunpack.c.l.b16 %v513
    %v798 = vunpack.c.l.b16 %v514
    %v799 = vunpack.c.l.b16 %v515
    %v800 = vunpack.c.l.b16 %v516
    %v801 = vunpack.c.l.b16 %v517
    %v802 = vunpack.c.l.b16 %v518
    %v803 = vunpack.c.l.b16 %v519
    %v804 = vunpack.c.l.b16 %v520
    %v805 = vunpack.c.l.b16 %v521
    %v806 = vunpack.c.l.b16 %v522
    %v807 = vunpack.c.l.b16 %v523
    %v808 = vunpack.c.l.b16 %v524
    %v809 = vunpack.c.l.b16 %v525
    %v810 = vunpack.c.l.b16 %v526
    %v811 = vunpack.c.l.b16 %v527
    %v812 = vunpack.c.l.b16 %v528
    %v813 = vunpack.c.l.b16 %v529
    %v814 = vunpack.c.l.b16 %v530
    %v815 = vunpack.c.l.b16 %v531
    %v816 = vunpack.c.l.b16 %v532
    %v817 = vunpack.c.l.b16 %v533
    %v818 = vunpack.c.l.b16 %v534
    %v819 = vunpack.c.l.b16 %v535
    %v820 = vunpack.c.l.b16 %v536
    %v821 = vunpack.c.l.b16 %v537
    %v822 = vunpack.c.l.b16 %v538
    %v823 = vunpack.c.l.b16 %v539
    %v824 = vunpack.c.l.b16 %v540
    %v825 = vunpack.c.l.b16 %v541
    %v826 = vunpack.c.l.b16 %v542
    %v827 = vunpack.c.l.b16 %v543
    %v828 = vunpack.c.l.b16 %v544
    %v829 = vunpack.c.l.b16 %v545
    %v830 = vunpack.c.l.b16 %v546
    %v831 = vunpack.c.l.b16 %v547
    %v832 = vunpack.c.l.b16 %v548
    %v833 = vunpack.c.l.b16 %v549
    %v834 = vunpack.c.l.b16 %v550
    %v835 = vunpack.c.l.b16 %v551
    %v836 = vunpack.c.l.b16 %v552
    %v837 = vunpack.c.l.b16 %v553
    %v838 = vunpack.c.l.b16 %v554
    %v839 = vunpack.c.l.b16 %v555
    %v840 = vunpack.c.l.b16 %v556
    %v841 = vunpack.c.l.b16 %v557
    %v842 = vunpack.c.l.b16 %v558
    %v843 = vunpack.c.l.b16 %v559
    %v844 = vunpack.c.l.b16 %v560
    %v845 = vunpack.c.l.b16 %v561
    %v846 = vunpack.c.l.b16 %v562
    %v847 = vunpack.c.l.b16 %v563
    %v848 = vunpack.c.l.b16 %v564
    %v849 = vunpack.c.l.b16 %v565
    %v850 = vpack.c.b16 %v723, %v722
    %v851 = vpack.c.b16 %v725, %v724
    %v852 = vpack.c.b16 %v727, %v726
    %v853 = vpack.c.b16 %v729, %v728
    %v854 = vpack.c.b16 %v731, %v730
    %v855 = vpack.c.b16 %v733, %v732
    %v856 = vpack.c.b16 %v735, %v734
    %v857 = vpack.c.b16 %v737, %v736
    %v858 = vpack.c.b16 %v739, %v738
    %v859 = vpack.c.b16 %v741, %v740
    %v860 = vpack.c.b16 %v743, %v742
    %v861 = vpack.c.b16 %v745, %v744
    %v862 = vpack.c.b16 %v747, %v746
    %v863 = vpack.c.b16 %v749, %v748
    %v864 = vpack.c.b16 %v751, %v750
    %v865 = vpack.c.b16 %v753, %v752
    %v866 = vpack.c.b16 %v755, %v754
    %v867 = vpack.c.b16 %v757, %v756
    %v868 = vpack.c.b16 %v759, %v758
    %v869 = vpack.c.b16 %v761, %v760
    %v870 = vpack.c.b16 %v763, %v762
    %v871 = vpack.c.b16 %v765, %v764
    %v872 = vpack.c.b16 %v767, %v766
    %v873 = vpack.c.b16 %v769, %v768
    %v874 = vpack.c.b16 %v771, %v770
    %v875 = vpack.c.b16 %v773, %v772
    %v876 = vpack.c.b16 %v775, %v774
    %v877 = vpack.c.b16 %v777, %v776
    %v878 = vpack.c.b16 %v779, %v778
    %v879 = vpack.c.b16 %v781, %v780
    %v880 = vpack.c.b16 %v783, %v782
    %v881 = vpack.c.b16 %v785, %v784
    %v882 = vpack.c.b16 %v787, %v786
    %v883 = vpack.c.b16 %v789, %v788
    %v884 = vpack.c.b16 %v791, %v790
    %v885 = vpack.c.b16 %v793, %v792
    %v886 = vpack.c.b16 %v795, %v794
    %v887 = vpack.c.b16 %v797, %v796
    %v888 = vpack.c.b16 %v799, %v798
    %v889 = vpack.c.b16 %v801, %v800
    %v890 = vpack.c.b16 %v803, %v802
    %v891 = vpack.c.b16 %v805, %v804
    %v892 = vpack.c.b16 %v807, %v806
    %v893 = vpack.c.b16 %v809, %v808
    %v894 = vpack.c.b16 %v811, %v810
    %v895 = vpack.c.b16 %v813, %v812
    %v896 = vpack.c.b16 %v815, %v814
    %v897 = vpack.c.b16 %v817, %v816
    %v898 = vpack.c.b16 %v819, %v818
    %v899 = vpack.c.b16 %v821, %v820
    %v900 = vpack.c.b16 %v823, %v822
    %v901 = vpack.c.b16 %v825, %v824
    %v902 = vpack.c.b16 %v827, %v826
    %v903 = vpack.c.b16 %v829, %v828
    %v904 = vpack.c.b16 %v831, %v830
    %v905 = vpack.c.b16 %v833, %v832
    %v906 = vpack.c.b16 %v835, %v834
    %v907 = vpack.c.b16 %v837, %v836
    %v908 = vpack.c.b16 %v839, %v838
    %v909 = vpack.c.b16 %v841, %v840
    %v910 = vpack.c.b16 %v843, %v842
    %v911 = vpack.c.b16 %v845, %v844
    %v912 = vpack.c.b16 %v847, %v846
    %v913 = vpack.c.b16 %v849, %v848
    %978 = vmatprep.subr.bf16.mxu0 0
    %979 = vmatpush1.bf16.msra.mxu0 %v857
    %980 = vmatprep.subr.bf16.mxu0 0
    %981 = vmatpush1.bf16.msra.mxu0 %v856
    %982 = vmatprep.subr.bf16.mxu0 0
    %983 = vmatpush1.bf16.msra.mxu0 %v855
    %984 = vmatprep.subr.bf16.mxu0 0
    %985 = vmatpush1.bf16.msra.mxu0 %v854
    %986 = vmatprep.subr.bf16.mxu0 0
    %987 = vmatpush1.bf16.msra.mxu0 %v853
    %988 = vmatprep.subr.bf16.mxu0 0
    %989 = vmatpush1.bf16.msra.mxu0 %v852
    %990 = vmatprep.subr.bf16.mxu0 0
    %991 = vmatpush1.bf16.msra.mxu0 %v851
    %992 = vmatprep.subr.bf16.mxu0 0
    %993 = vmatpush1.bf16.msra.mxu0 %v850
    %994 = vmatprep.subr.bf16.mxu0 0
    %995 = vmatpush2.bf16.msra.mxu0 %v865
    %996 = vmatprep.subr.bf16.mxu0 0
    %997 = vmatpush2.bf16.msra.mxu0 %v864
    %998 = vmatprep.subr.bf16.mxu0 0
    %999 = vmatpush2.bf16.msra.mxu0 %v863
    %1000 = vmatprep.subr.bf16.mxu0 0
    %1001 = vmatpush2.bf16.msra.mxu0 %v862
    %1002 = vmatprep.subr.bf16.mxu0 0
    %1003 = vmatpush2.bf16.msra.mxu0 %v861
    %1004 = vmatprep.subr.bf16.mxu0 0
    %1005 = vmatpush2.bf16.msra.mxu0 %v860
    %1006 = vmatprep.subr.bf16.mxu0 0
    %1007 = vmatpush2.bf16.msra.mxu0 %v859
    %1008 = vmatprep.subr.bf16.mxu0 0
    %1009 = vmatpush2.bf16.msra.mxu0 %v858
    %1010 = vmatprep.mubr.bf16.mxu0 %v579
    %1011 = vmatmul.mubr.bf16.gmra.mxu0 %v578
    %v1012 = vpop.f32.mrf.mxu0
    %v1013 = vadd.f32 0.0, %v1012
    %v1014 = vpop.f32.mrf.mxu0
    %v1015 = vpop.f32.mrf.mxu0
    %v1016 = vpop.f32.mrf.mxu0
    %1017 = vdwg.mxu0
    %1018 = vmatprep.subr.bf16.mxu0 0
    %1019 = vmatpush1.bf16.msra.mxu0 %v873
    %1020 = vmatprep.subr.bf16.mxu0 0
    %1021 = vmatpush1.bf16.msra.mxu0 %v872
    %1022 = vmatprep.subr.bf16.mxu0 0
    %1023 = vmatpush1.bf16.msra.mxu0 %v871
    %1024 = vmatprep.subr.bf16.mxu0 0
    %1025 = vmatpush1.bf16.msra.mxu0 %v870
    %1026 = vmatprep.subr.bf16.mxu0 0
    %1027 = vmatpush1.bf16.msra.mxu0 %v869
    %1028 = vmatprep.subr.bf16.mxu0 0
    %1029 = vmatpush1.bf16.msra.mxu0 %v868
    %1030 = vmatprep.subr.bf16.mxu0 0
    %1031 = vmatpush1.bf16.msra.mxu0 %v867
    %1032 = vmatprep.subr.bf16.mxu0 0
    %1033 = vmatpush1.bf16.msra.mxu0 %v866
    %1034 = vmatprep.subr.bf16.mxu0 0
    %1035 = vmatpush2.bf16.msra.mxu0 %v881
    %1036 = vmatprep.subr.bf16.mxu0 0
    %1037 = vmatpush2.bf16.msra.mxu0 %v880
    %1038 = vmatprep.subr.bf16.mxu0 0
    %1039 = vmatpush2.bf16.msra.mxu0 %v879
    %1040 = vmatprep.subr.bf16.mxu0 0
    %1041 = vmatpush2.bf16.msra.mxu0 %v878
    %1042 = vmatprep.subr.bf16.mxu0 0
    %1043 = vmatpush2.bf16.msra.mxu0 %v877
    %1044 = vmatprep.subr.bf16.mxu0 0
    %1045 = vmatpush2.bf16.msra.mxu0 %v876
    %1046 = vmatprep.subr.bf16.mxu0 0
    %1047 = vmatpush2.bf16.msra.mxu0 %v875
    %1048 = vmatprep.subr.bf16.mxu0 0
    %1049 = vmatpush2.bf16.msra.mxu0 %v874
    %1050 = vmatprep.mubr.bf16.mxu0 %v581
    %1051 = vmatmul.mubr.bf16.gmra.mxu0 %v580
    %v1052 = vpop.f32.mrf.mxu0
    %v1053 = vadd.f32 %v1013, %v1052
    %v1054 = vpop.f32.mrf.mxu0
    %v1055 = vpop.f32.mrf.mxu0
    %v1056 = vpop.f32.mrf.mxu0
    %1057 = vdwg.mxu0
    %1058 = vmatprep.subr.bf16.mxu0 0
    %1059 = vmatpush1.bf16.msra.mxu0 %v889
    %1060 = vmatprep.subr.bf16.mxu0 0
    %1061 = vmatpush1.bf16.msra.mxu0 %v888
    %1062 = vmatprep.subr.bf16.mxu0 0
    %1063 = vmatpush1.bf16.msra.mxu0 %v887
    %1064 = vmatprep.subr.bf16.mxu0 0
    %1065 = vmatpush1.bf16.msra.mxu0 %v886
    %1066 = vmatprep.subr.bf16.mxu0 0
    %1067 = vmatpush1.bf16.msra.mxu0 %v885
    %1068 = vmatprep.subr.bf16.mxu0 0
    %1069 = vmatpush1.bf16.msra.mxu0 %v884
    %1070 = vmatprep.subr.bf16.mxu0 0
    %1071 = vmatpush1.bf16.msra.mxu0 %v883
    %1072 = vmatprep.subr.bf16.mxu0 0
    %1073 = vmatpush1.bf16.msra.mxu0 %v882
    %1074 = vmatprep.subr.bf16.mxu0 0
    %1075 = vmatpush2.bf16.msra.mxu0 %v897
    %1076 = vmatprep.subr.bf16.mxu0 0
    %1077 = vmatpush2.bf16.msra.mxu0 %v896
    %1078 = vmatprep.subr.bf16.mxu0 0
    %1079 = vmatpush2.bf16.msra.mxu0 %v895
    %1080 = vmatprep.subr.bf16.mxu0 0
    %1081 = vmatpush2.bf16.msra.mxu0 %v894
    %1082 = vmatprep.subr.bf16.mxu0 0
    %1083 = vmatpush2.bf16.msra.mxu0 %v893
    %1084 = vmatprep.subr.bf16.mxu0 0
    %1085 = vmatpush2.bf16.msra.mxu0 %v892
    %1086 = vmatprep.subr.bf16.mxu0 0
    %1087 = vmatpush2.bf16.msra.mxu0 %v891
    %1088 = vmatprep.subr.bf16.mxu0 0
    %1089 = vmatpush2.bf16.msra.mxu0 %v890
    %1090 = vmatprep.mubr.bf16.mxu0 %v583
    %1091 = vmatmul.mubr.bf16.gmra.mxu0 %v582
    %v1092 = vpop.f32.mrf.mxu0
    %v1093 = vadd.f32 %v1053, %v1092
    %v1094 = vpop.f32.mrf.mxu0
    %v1095 = vpop.f32.mrf.mxu0
    %v1096 = vpop.f32.mrf.mxu0
    %1097 = vdwg.mxu0
    %1098 = vmatprep.subr.bf16.mxu0 0
    %1099 = vmatpush1.bf16.msra.mxu0 %v905
    %1100 = vmatprep.subr.bf16.mxu0 0
    %1101 = vmatpush1.bf16.msra.mxu0 %v904
    %1102 = vmatprep.subr.bf16.mxu0 0
    %1103 = vmatpush1.bf16.msra.mxu0 %v903
    %1104 = vmatprep.subr.bf16.mxu0 0
    %1105 = vmatpush1.bf16.msra.mxu0 %v902
    %1106 = vmatprep.subr.bf16.mxu0 0
    %1107 = vmatpush1.bf16.msra.mxu0 %v901
    %1108 = vmatprep.subr.bf16.mxu0 0
    %1109 = vmatpush1.bf16.msra.mxu0 %v900
    %1110 = vmatprep.subr.bf16.mxu0 0
    %1111 = vmatpush1.bf16.msra.mxu0 %v899
    %1112 = vmatprep.subr.bf16.mxu0 0
    %1113 = vmatpush1.bf16.msra.mxu0 %v898
    %1114 = vmatprep.subr.bf16.mxu0 0
    %1115 = vmatpush2.bf16.msra.mxu0 %v913
    %1116 = vmatprep.subr.bf16.mxu0 0
    %1117 = vmatpush2.bf16.msra.mxu0 %v912
    %1118 = vmatprep.subr.bf16.mxu0 0
    %1119 = vmatpush2.bf16.msra.mxu0 %v911
    %1120 = vmatprep.subr.bf16.mxu0 0
    %1121 = vmatpush2.bf16.msra.mxu0 %v910
    %1122 = vmatprep.subr.bf16.mxu0 0
    %1123 = vmatpush2.bf16.msra.mxu0 %v909
    %1124 = vmatprep.subr.bf16.mxu0 0
    %1125 = vmatpush2.bf16.msra.mxu0 %v908
    %1126 = vmatprep.subr.bf16.mxu0 0
    %1127 = vmatpush2.bf16.msra.mxu0 %v907
    %1128 = vmatprep.subr.bf16.mxu0 0
    %1129 = vmatpush2.bf16.msra.mxu0 %v906
    %1130 = vmatprep.mubr.bf16.mxu0 %v585
    %1131 = vmatmul.mubr.bf16.gmra.mxu0 %v584
    %v1132 = vpop.f32.mrf.mxu0
    %v1133 = vadd.f32 %v1093, %v1132
    %v1134 = vpop.f32.mrf.mxu0
    %v1135 = vpop.f32.mrf.mxu0
    %v1136 = vpop.f32.mrf.mxu0
    %1137 = vdwg.mxu0
    %v1138 = vmul.f32 %v1133, %v1133
    %1139 = vadd.xlane.f32.xlu0 %v1138
    %v1140 = vpop.xlane.xlu0 %1139
    %v1141 = vadd.f32 %v1140, 1e-12
    %v1142 = vrsqrt.pop %v1141
    %v1143 = vmul.f32 %v1133, %v1142
    %v1144 = vpack.c.bf16 %v1143, %v1143
    %1145 = vmatprep.subr.bf16.mxu0 0
    %1146 = vmatpush1.bf16.xpose.msra.mxu0 0
    %1147 = vmatprep.subr.bf16.mxu0 0
    %1148 = vmatpush1.bf16.xpose.msra.mxu0 0
    %1149 = vmatprep.subr.bf16.mxu0 0
    %1150 = vmatpush1.bf16.xpose.msra.mxu0 0
    %1151 = vmatprep.subr.bf16.mxu0 0
    %1152 = vmatpush1.bf16.xpose.msra.mxu0 0
    %1153 = vmatprep.subr.bf16.mxu0 0
    %1154 = vmatpush1.bf16.xpose.msra.mxu0 0
    %1155 = vmatprep.subr.bf16.mxu0 0
    %1156 = vmatpush1.bf16.xpose.msra.mxu0 0
    %1157 = vmatprep.subr.bf16.mxu0 0
    %1158 = vmatpush1.bf16.xpose.msra.mxu0 0
    %1159 = vmatprep.subr.bf16.mxu0 0
    %1160 = vmatpush1.bf16.xpose.msra.mxu0 %v433
    %1161 = vmatprep.subr.bf16.mxu0 0
    %1162 = vmatpush2.bf16.xpose.msra.mxu0 0
    %1163 = vmatprep.subr.bf16.mxu0 0
    %1164 = vmatpush2.bf16.xpose.msra.mxu0 0
    %1165 = vmatprep.subr.bf16.mxu0 0
    %1166 = vmatpush2.bf16.xpose.msra.mxu0 0
    %1167 = vmatprep.subr.bf16.mxu0 0
    %1168 = vmatpush2.bf16.xpose.msra.mxu0 0
    %1169 = vmatprep.subr.bf16.mxu0 0
    %1170 = vmatpush2.bf16.xpose.msra.mxu0 0
    %1171 = vmatprep.subr.bf16.mxu0 0
    %1172 = vmatpush2.bf16.xpose.msra.mxu0 0
    %1173 = vmatprep.subr.bf16.mxu0 0
    %1174 = vmatpush2.bf16.xpose.msra.mxu0 0
    %1175 = vmatprep.subr.bf16.mxu0 0
    %1176 = vmatpush2.bf16.xpose.msra.mxu0 0
    %1177 = vmatprep.mubr.bf16.mxu0 0
    %1178 = vmatmul.mubr.bf16.gmra.mxu0 %v1144
    %v1179 = vpop.f32.mrf.mxu0
    %v1180 = vadd.f32 0.0, %v1179
    %v1181 = vpop.f32.mrf.mxu0
    %v1182 = vpop.f32.mrf.mxu0
    %v1183 = vpop.f32.mrf.mxu0
    %1184 = vdwg.mxu0
    %v1185 = vstv %s74
    %v1186 = vmul.f32 %v1185, %v1180
    %vm1187 = vcmask 64512
    %1188 = vst.msk [vmem:[#allocation11] sm:$0xff] %vm1187, %v1186
    // Predicated region
    $region38: #{tpu_custom_call.1} parent=1 // pred_check
      _
    $region39: #{tpu_custom_call.1} parent=1 // pred_check_branch
      %1190 = sbr.rel (0) target = $region41
    $region40: #{tpu_custom_call.1} parent=1 // pred_region
      %s1192 = ssub.s32 128, 128
      %1193 = vsyncadd [#allocation5], %s1192
      %s1195 = sshll.u32 [#allocation11], 4
      %s1196 = int_to_ptr.vmem [resolvable:$true] %s1195
      %1198 = dma.vmem_to_hbm [thread:$0]  %s1196, 128, %s5, [#allocation5]
    $region41: #{tpu_custom_call.1} parent=1 // pred_fallthru
      _
    // Predicated region
    $region42: #{tpu_custom_call.1} parent=1 // pred_check
      _
    $region43: #{tpu_custom_call.1} parent=1 // pred_check_branch
      %1200 = sbr.rel (0) target = $region45
    $region44: #{tpu_custom_call.1} parent=1 // pred_region
      %1201 = dma.done [#allocation5], 128
    $region45: #{tpu_custom_call.1} parent=1 // pred_fallthru
      _
    %1202 = vsyncpa [#allocation4], 1
    %1203 = vsyncpa [#allocation7], 1
    %1204 = vsyncpa [#allocation10], 1
    %1205 = vsyncpa [#allocation5], 1

</llo_original>
